<compile_context>
chip_gen: v7x
topology: tpu7x:2x2x1
jax: 0.10.0
libtpu: 0.0.40
codegen_flags: <defaults>
</compile_context>

<pallas_src>
import functools

import jax
import jax.numpy as jnp
from jax import lax
from jax.experimental import pallas as pl
from jax.experimental.pallas import tpu as pltpu

EPS = 1e-5


def _projector_kernel(x_ref, w1_ref, w2_ref, w3_ref, b3_ref, gamma_ref,
                      beta_ref, o_ref, h_ref, s1_ref, q1_ref, s2_ref, q2_ref,
                      *, batch, tile_b, b_pad):
    p = pl.program_id(0)   # phase: 0 = fc1/BN1-stats, 1 = fc2/BN2-stats, 2 = fc3
    j = pl.program_id(1)   # batch tile
    row0 = pl.multiple_of(j * tile_b, tile_b)
    inv_b = 1.0 / batch

    # ---------------- phase 0: fc1 + BN1 statistics -------------------------
    @pl.when(p == 0)
    def _phase0():
        @pl.when(j == 0)
        def _init():
            s1_ref[...] = jnp.zeros_like(s1_ref)
            q1_ref[...] = jnp.zeros_like(q1_ref)
            s2_ref[...] = jnp.zeros_like(s2_ref)
            q2_ref[...] = jnp.zeros_like(q2_ref)

        # b1 omitted: a constant per-feature bias cancels exactly through
        # training-mode BatchNorm (mean subtraction).
        h1 = jnp.dot(x_ref[...].astype(jnp.bfloat16), w1_ref[...],
                     preferred_element_type=jnp.float32)
        s1_ref[...] += jnp.sum(h1, axis=0, keepdims=True)
        q1_ref[...] += jnp.sum(h1 * h1, axis=0, keepdims=True)
        h_ref[pl.ds(row0, tile_b), :] = h1.astype(h_ref.dtype)

    # -------- phase 1: BN1 affine -> ReLU -> fc2 + BN2 statistics -----------
    @pl.when(p == 1)
    def _phase1():
        mean1 = s1_ref[...] * inv_b
        var1 = q1_ref[...] * inv_b - mean1 * mean1
        a1 = gamma_ref[...] * lax.rsqrt(var1 + EPS)   # folded BN affine
        c1 = beta_ref[...] - mean1 * a1

        h = h_ref[pl.ds(row0, tile_b), :].astype(jnp.float32)
        h = jnp.maximum(h * a1 + c1, 0.0)
        if b_pad != batch:
            # zero padded tail rows (cheap per-tile mask) so BN2 stats are exact
            rows = lax.broadcasted_iota(jnp.int32, (tile_b, 1), 0)
            h = jnp.where(rows < batch - j * tile_b, h, 0.0)

        h2 = jnp.dot(h.astype(jnp.bfloat16), w2_ref[...],
                     preferred_element_type=jnp.float32)
        s2_ref[...] += jnp.sum(h2, axis=0, keepdims=True)
        q2_ref[...] += jnp.sum(h2 * h2, axis=0, keepdims=True)
        h_ref[pl.ds(row0, tile_b), :] = h2.astype(h_ref.dtype)

    # -------- phase 2: BN2 affine -> ReLU -> fc3 + b3 (tiled output) --------
    @pl.when(p == 2)
    def _phase2():
        mean2 = s2_ref[...] * inv_b
        var2 = q2_ref[...] * inv_b - mean2 * mean2
        a2 = gamma_ref[...] * lax.rsqrt(var2 + EPS)
        c2 = beta_ref[...] - mean2 * a2

        h2 = h_ref[pl.ds(row0, tile_b), :].astype(jnp.float32)
        h2 = jnp.maximum(h2 * a2 + c2, 0.0)
        out = jnp.dot(h2.astype(jnp.bfloat16), w3_ref[...],
                      preferred_element_type=jnp.float32) + b3_ref[...]
        o_ref[...] = out.astype(o_ref.dtype)


def _round_up(x, m):
    return (x + m - 1) // m * m


def _invariant_spec(shape):
    """Constant-index operand: fetched once, single-buffered when supported."""
    index_map = lambda p, j: (0,) * len(shape)
    try:
        return pl.BlockSpec(shape, index_map, pipeline_mode=pl.Buffered(1))
    except (TypeError, AttributeError):
        return pl.BlockSpec(shape, index_map)


def projector_forward(x, w1, b1, w2, b2, w3, b3, gamma, beta, *, block_b=None):
    """Projector forward (PyTorch training-mode BatchNorm semantics).

    x: (B, input_dim) f32 or bf16; weights pre-transposed to (in, out).
    b1 / b2 are accepted for interface parity but cancel exactly through
    training-mode BatchNorm, so they are not used.
    """
    del b1, b2  # exact no-ops through training-mode BatchNorm
    B, in_dim = x.shape
    H = w1.shape[1]
    itemsize = x.dtype.itemsize

    # Batch tile: multiple of 8 sublanes; default sized so the per-step x DMA
    # is >= ~512 KiB (fc1 is HBM-streaming bound), capped at 1024 rows.
    if block_b is None:
        dma_rows = -(-(512 * 1024) // max(in_dim * itemsize, 1))
        block_b = max(256, min(1024, _round_up(dma_rows, 8)))
    tile_b = _round_up(min(block_b, _round_up(B, 8)), 8)
    b_pad = _round_up(B, tile_b)
    if b_pad != B:
        x = jnp.pad(x, ((0, b_pad - B), (0, 0)))
    n_tiles = b_pad // tile_b

    # bf16 weights for the MXU (accumulation stays f32 in-kernel)
    w1b = w1.astype(jnp.bfloat16)
    w2b = w2.astype(jnp.bfloat16)
    w3b = w3.astype(jnp.bfloat16)
    b3r = jnp.asarray(b3, jnp.float32).reshape(1, H)
    gamma_r = jnp.asarray(gamma, jnp.float32).reshape(1, H)
    beta_r = jnp.asarray(beta, jnp.float32).reshape(1, H)

    # VMEM budget (includes per-tile temporaries), clamped to device capacity.
    est = (2 * tile_b * in_dim * itemsize     # x tile (double buffered)
           + in_dim * H * 2                   # w1 (bf16, single buffered)
           + 2 * H * H * 2                    # w2, w3 (bf16, single buffered)
           + 3 * 2 * H * 4                    # b3, gamma, beta
           + 2 * tile_b * H * 4               # output tile (double buffered)
           + b_pad * H * 2                    # bf16 activation scratch
           + 4 * H * 4                        # BN statistic scratch
           + 6 * tile_b * H * 4)              # in-kernel per-tile temporaries
    vmem_limit = max(int(1.25 * est) + (4 << 20), 16 << 20)
    try:
        vmem_cap = int(pltpu.get_tpu_info().vmem_capacity_bytes)
    except Exception:
        vmem_cap = 64 << 20                   # conservative (v7x) fallback
    vmem_limit = min(vmem_limit, int(0.9 * vmem_cap))

    kernel = functools.partial(_projector_kernel, batch=B, tile_b=tile_b,
                               b_pad=b_pad)
    last = n_tiles - 1

    grid_spec = pltpu.PrefetchScalarGridSpec(
        num_scalar_prefetch=0,
        grid=(3, n_tiles),
        in_specs=[
            # x only advances during phase 0; frozen afterwards (no refetch)
            pl.BlockSpec((tile_b, in_dim),
                         lambda p, j: (jnp.where(p == 0, j, last), 0)),
            _invariant_spec((in_dim, H)),     # w1
            _invariant_spec((H, H)),          # w2
            _invariant_spec((H, H)),          # w3
            _invariant_spec((1, H)),          # b3
            _invariant_spec((1, H)),          # gamma
            _invariant_spec((1, H)),          # beta
        ],
        # output only advances during phase 2 (tiled writeback overlaps compute)
        out_specs=pl.BlockSpec((tile_b, H),
                               lambda p, j: (jnp.where(p == 2, j, 0), 0)),
        scratch_shapes=[
            pltpu.VMEM((b_pad, H), jnp.bfloat16),   # fc1/fc2 activations (reused)
            pltpu.VMEM((1, H), jnp.float32),        # BN1 sum
            pltpu.VMEM((1, H), jnp.float32),        # BN1 sum of squares
            pltpu.VMEM((1, H), jnp.float32),        # BN2 sum
            pltpu.VMEM((1, H), jnp.float32),        # BN2 sum of squares
        ],
    )

    out = pl.pallas_call(
        kernel,
        out_shape=jax.ShapeDtypeStruct((b_pad, H), jnp.float32),
        grid_spec=grid_spec,
        compiler_params=pltpu.CompilerParams(
            dimension_semantics=("arbitrary", "arbitrary"),
            vmem_limit_bytes=vmem_limit,
        ),
    )(x, w1b, w2b, w3b, b3r, gamma_r, beta_r)
    return out[:B]


def _reference_forward(x, w1, b1, w2, b2, w3, b3, gamma, beta,
                       matmul_dtype=jnp.float32):
    """Straight JAX reference of the PyTorch module (training-mode BN)."""
    def mm(a, b):
        return jnp.dot(a.astype(matmul_dtype), b.astype(matmul_dtype),
                       preferred_element_type=jnp.float32)

    def bn(h):
        mean = jnp.mean(h, axis=0, keepdims=True)
        var = jnp.mean((h - mean) ** 2, axis=0, keepdims=True)
        return (h - mean) / jnp.sqrt(var + EPS) * gamma + beta

    h = mm(x, w1) + b1
    h = jnp.maximum(bn(h), 0.0)
    h = mm(h, w2) + b2
    h = jnp.maximum(bn(h), 0.0)
    return mm(h, w3) + b3


if __name__ == "__main__":
    # Small demo shapes consistent with the module (input_dim scaled down,
    # hidden=128 kept for lane alignment).  B=20 with block_b=16 exercises the
    # multi-tile phase pipeline, BN-stat accumulation, and the padding mask.
    B, IN_DIM, HID = 20, 64, 128

    key = jax.random.PRNGKey(0)
    ks = jax.random.split(key, 7)

    # PyTorch Linear stores weight as (out, in); we pre-transpose to (in, out).
    def linear_init(kw, kb, fan_in, fan_out):
        bound = 1.0 / float(fan_in) ** 0.5
        w = jax.random.uniform(kw, (fan_in, fan_out), jnp.float32, -bound, bound)
        b = jax.random.uniform(kb, (1, fan_out), jnp.float32, -bound, bound)
        return w, b

    x = jax.random.normal(ks[0], (B, IN_DIM), jnp.float32)
    w1, b1 = linear_init(ks[1], ks[2], IN_DIM, HID)
    w2, b2 = linear_init(ks[3], ks[4], HID, HID)
    w3, b3 = linear_init(ks[5], ks[6], HID, HID)
    gamma = jnp.ones((1, HID), jnp.float32)   # BatchNorm1d weight init
    beta = jnp.zeros((1, HID), jnp.float32)   # BatchNorm1d bias init

    out = projector_forward(x, w1, b1, w2, b2, w3, b3, gamma, beta, block_b=16)
    out = jax.block_until_ready(out)
    assert out.shape == (B, HID)

    # Reference with the same matmul precision (bf16 operands, f32 accum);
    # BN / ReLU / bias math identical to the PyTorch module (b1/b2 included
    # here — they cancel through BN, validating the kernel's bias elision).
    ref = _reference_forward(x, w1, b1, w2, b2, w3, b3, gamma, beta,
                             matmul_dtype=jnp.bfloat16)
    max_err = float(jnp.max(jnp.abs(out - ref)))
    assert jnp.allclose(out, ref, atol=3e-2, rtol=3e-2), \
        f"mismatch vs reference (max abs err {max_err})"

    print("KERNEL_OK")
</pallas_src>

<mosaic_0001>
module attributes {stable_mosaic.version = 11 : i64} {
  func.func @_projector_kernel(%arg0: i32, %arg1: i32, %arg2: memref<16x64xf32, #tpu.memory_space<vmem>>, %arg3: memref<64x128xbf16, #tpu.memory_space<vmem>>, %arg4: memref<128x128xbf16, #tpu.memory_space<vmem>>, %arg5: memref<128x128xbf16, #tpu.memory_space<vmem>>, %arg6: memref<1x128xf32, #tpu.memory_space<vmem>>, %arg7: memref<1x128xf32, #tpu.memory_space<vmem>>, %arg8: memref<1x128xf32, #tpu.memory_space<vmem>>, %arg9: memref<16x128xf32, #tpu.memory_space<vmem>>, %arg10: memref<32x128xbf16, #tpu.memory_space<vmem>>, %arg11: memref<1x128xf32, #tpu.memory_space<vmem>>, %arg12: memref<1x128xf32, #tpu.memory_space<vmem>>, %arg13: memref<1x128xf32, #tpu.memory_space<vmem>>, %arg14: memref<1x128xf32, #tpu.memory_space<vmem>>) attributes {dimension_semantics = [#tpu.dimension_semantics<arbitrary>, #tpu.dimension_semantics<arbitrary>], iteration_bounds = array<i64: 3, 2>, scalar_prefetch = 0 : i64, scratch_operands = 5 : i64, tpu.core_type = #tpu.core_type<tc>, window_params = [{transform_indices = @transform_0, window_bounds = array<i64: 16, 64>}, {pipeline_mode = #tpu.pipeline_mode<synchronous>, transform_indices = @transform_1, window_bounds = array<i64: 64, 128>}, {pipeline_mode = #tpu.pipeline_mode<synchronous>, transform_indices = @transform_2, window_bounds = array<i64: 128, 128>}, {pipeline_mode = #tpu.pipeline_mode<synchronous>, transform_indices = @transform_3, window_bounds = array<i64: 128, 128>}, {pipeline_mode = #tpu.pipeline_mode<synchronous>, transform_indices = @transform_4, window_bounds = array<i64: 1, 128>}, {pipeline_mode = #tpu.pipeline_mode<synchronous>, transform_indices = @transform_5, window_bounds = array<i64: 1, 128>}, {pipeline_mode = #tpu.pipeline_mode<synchronous>, transform_indices = @transform_6, window_bounds = array<i64: 1, 128>}, {transform_indices = @transform_7, window_bounds = array<i64: 16, 128>}]} {
    %c16_i32 = arith.constant 16 : i32
    %0 = arith.muli %arg1, %c16_i32 : i32
    %1 = tpu.assume_multiple %0, 16 : i32
    %c0_i32 = arith.constant 0 : i32
    %2 = arith.cmpi eq, %arg0, %c0_i32 : i32
    %3 = arith.extui %2 : i1 to i32
    %c0_i32_0 = arith.constant 0 : i32
    %4 = arith.cmpi ne, %3, %c0_i32_0 : i32
    scf.if %4 {
      %c0_i32_3 = arith.constant 0 : i32
      %11 = arith.cmpi eq, %arg1, %c0_i32_3 : i32
      %12 = arith.extui %11 : i1 to i32
      %c0_i32_4 = arith.constant 0 : i32
      %13 = arith.cmpi ne, %12, %c0_i32_4 : i32
      scf.if %13 {
        %cst_19 = arith.constant 0.000000e+00 : f32
        %32 = vector.broadcast %cst_19 : f32 to vector<1x128xf32>
        %c0_20 = arith.constant 0 : index
        %c0_21 = arith.constant 0 : index
        %33 = vector.load %arg11[%c0_20, %c0_21] : memref<1x128xf32, #tpu.memory_space<vmem>>, vector<1x128xf32>
        tpu.vector_store %arg11[%c0_20, %c0_21], %32 {strides = array<i32>} : memref<1x128xf32, #tpu.memory_space<vmem>>, vector<1x128xf32>,
        %cst_22 = arith.constant 0.000000e+00 : f32
        %34 = vector.broadcast %cst_22 : f32 to vector<1x128xf32>
        %c0_23 = arith.constant 0 : index
        %c0_24 = arith.constant 0 : index
        %35 = vector.load %arg12[%c0_23, %c0_24] : memref<1x128xf32, #tpu.memory_space<vmem>>, vector<1x128xf32>
        tpu.vector_store %arg12[%c0_23, %c0_24], %34 {strides = array<i32>} : memref<1x128xf32, #tpu.memory_space<vmem>>, vector<1x128xf32>,
        %cst_25 = arith.constant 0.000000e+00 : f32
        %36 = vector.broadcast %cst_25 : f32 to vector<1x128xf32>
        %c0_26 = arith.constant 0 : index
        %c0_27 = arith.constant 0 : index
        %37 = vector.load %arg13[%c0_26, %c0_27] : memref<1x128xf32, #tpu.memory_space<vmem>>, vector<1x128xf32>
        tpu.vector_store %arg13[%c0_26, %c0_27], %36 {strides = array<i32>} : memref<1x128xf32, #tpu.memory_space<vmem>>, vector<1x128xf32>,
        %cst_28 = arith.constant 0.000000e+00 : f32
        %38 = vector.broadcast %cst_28 : f32 to vector<1x128xf32>
        %c0_29 = arith.constant 0 : index
        %c0_30 = arith.constant 0 : index
        %39 = vector.load %arg14[%c0_29, %c0_30] : memref<1x128xf32, #tpu.memory_space<vmem>>, vector<1x128xf32>
        tpu.vector_store %arg14[%c0_29, %c0_30], %38 {strides = array<i32>} : memref<1x128xf32, #tpu.memory_space<vmem>>, vector<1x128xf32>,
      } else {
      }
      %c0 = arith.constant 0 : index
      %c0_5 = arith.constant 0 : index
      %14 = vector.load %arg2[%c0, %c0_5] : memref<16x64xf32, #tpu.memory_space<vmem>>, vector<16x64xf32>
      %15 = arith.truncf %14 : vector<16x64xf32> to vector<16x64xbf16>
      %c0_6 = arith.constant 0 : index
      %c0_7 = arith.constant 0 : index
      %16 = vector.load %arg3[%c0_6, %c0_7] : memref<64x128xbf16, #tpu.memory_space<vmem>>, vector<64x128xbf16>
      %cst = arith.constant dense<0.000000e+00> : vector<16x128xf32>
      %17 = tpu.matmul %15, %16, %cst {dimension_numbers = #tpu.dot_dimension_numbers<[1], [0], [0], [1], [0, 0, 1, 1], [], []>} : vector<16x64xbf16>, vector<64x128xbf16>, vector<16x128xf32> -> vector<16x128xf32>
      %c0_8 = arith.constant 0 : index
      %c0_9 = arith.constant 0 : index
      %18 = vector.load %arg11[%c0_8, %c0_9] : memref<1x128xf32, #tpu.memory_space<vmem>>, vector<1x128xf32>
      %cst_10 = arith.constant dense<0.000000e+00> : vector<128xf32>
      %19 = vector.multi_reduction <add>, %17, %cst_10 [0] : vector<16x128xf32> to vector<128xf32>
      %20 = vector.shape_cast %19 : vector<128xf32> to vector<1x128xf32>
      %21 = arith.addf %18, %20 : vector<1x128xf32>
      %c0_11 = arith.constant 0 : index
      %c0_12 = arith.constant 0 : index
      %22 = vector.load %arg11[%c0_11, %c0_12] : memref<1x128xf32, #tpu.memory_space<vmem>>, vector<1x128xf32>
      tpu.vector_store %arg11[%c0_11, %c0_12], %21 {strides = array<i32>} : memref<1x128xf32, #tpu.memory_space<vmem>>, vector<1x128xf32>,
      %c0_13 = arith.constant 0 : index
      %c0_14 = arith.constant 0 : index
      %23 = vector.load %arg12[%c0_13, %c0_14] : memref<1x128xf32, #tpu.memory_space<vmem>>, vector<1x128xf32>
      %24 = arith.mulf %17, %17 : vector<16x128xf32>
      %cst_15 = arith.constant dense<0.000000e+00> : vector<128xf32>
      %25 = vector.multi_reduction <add>, %24, %cst_15 [0] : vector<16x128xf32> to vector<128xf32>
      %26 = vector.shape_cast %25 : vector<128xf32> to vector<1x128xf32>
      %27 = arith.addf %23, %26 : vector<1x128xf32>
      %c0_16 = arith.constant 0 : index
      %c0_17 = arith.constant 0 : index
      %28 = vector.load %arg12[%c0_16, %c0_17] : memref<1x128xf32, #tpu.memory_space<vmem>>, vector<1x128xf32>
      tpu.vector_store %arg12[%c0_16, %c0_17], %27 {strides = array<i32>} : memref<1x128xf32, #tpu.memory_space<vmem>>, vector<1x128xf32>,
      %29 = arith.truncf %17 : vector<16x128xf32> to vector<16x128xbf16>
      %30 = arith.index_cast %1 : i32 to index
      %c0_18 = arith.constant 0 : index
      %31 = vector.load %arg10[%30, %c0_18] : memref<32x128xbf16, #tpu.memory_space<vmem>>, vector<16x128xbf16>
      tpu.vector_store %arg10[%30, %c0_18], %29 {strides = array<i32>} : memref<32x128xbf16, #tpu.memory_space<vmem>>, vector<16x128xbf16>,
    } else {
    }
    %c1_i32 = arith.constant 1 : i32
    %5 = arith.cmpi eq, %arg0, %c1_i32 : i32
    %6 = arith.extui %5 : i1 to i32
    %c0_i32_1 = arith.constant 0 : i32
    %7 = arith.cmpi ne, %6, %c0_i32_1 : i32
    scf.if %7 {
      %c0 = arith.constant 0 : index
      %c0_3 = arith.constant 0 : index
      %11 = vector.load %arg11[%c0, %c0_3] : memref<1x128xf32, #tpu.memory_space<vmem>>, vector<1x128xf32>
      %cst = arith.constant 5.000000e-02 : f32
      %12 = vector.broadcast %cst : f32 to vector<1x128xf32>
      %13 = arith.mulf %11, %12 : vector<1x128xf32>
      %c0_4 = arith.constant 0 : index
      %c0_5 = arith.constant 0 : index
      %14 = vector.load %arg12[%c0_4, %c0_5] : memref<1x128xf32, #tpu.memory_space<vmem>>, vector<1x128xf32>
      %cst_6 = arith.constant 5.000000e-02 : f32
      %15 = vector.broadcast %cst_6 : f32 to vector<1x128xf32>
      %16 = arith.mulf %14, %15 : vector<1x128xf32>
      %17 = arith.mulf %13, %13 : vector<1x128xf32>
      %18 = arith.subf %16, %17 : vector<1x128xf32>
      %c0_7 = arith.constant 0 : index
      %c0_8 = arith.constant 0 : index
      %19 = vector.load %arg7[%c0_7, %c0_8] : memref<1x128xf32, #tpu.memory_space<vmem>>, vector<1x128xf32>
      %cst_9 = arith.constant 9.99999974E-6 : f32
      %20 = vector.broadcast %cst_9 : f32 to vector<1x128xf32>
      %21 = arith.addf %18, %20 : vector<1x128xf32>
      %22 = math.rsqrt %21 : vector<1x128xf32>
      %23 = arith.mulf %19, %22 : vector<1x128xf32>
      %c0_10 = arith.constant 0 : index
      %c0_11 = arith.constant 0 : index
      %24 = vector.load %arg8[%c0_10, %c0_11] : memref<1x128xf32, #tpu.memory_space<vmem>>, vector<1x128xf32>
      %25 = arith.mulf %13, %23 : vector<1x128xf32>
      %26 = arith.subf %24, %25 : vector<1x128xf32>
      %27 = arith.index_cast %1 : i32 to index
      %c0_12 = arith.constant 0 : index
      %28 = vector.load %arg10[%27, %c0_12] : memref<32x128xbf16, #tpu.memory_space<vmem>>, vector<16x128xbf16>
      %29 = arith.extf %28 : vector<16x128xbf16> to vector<16x128xf32>
      %30 = vector.broadcast %23 : vector<1x128xf32> to vector<16x128xf32>
      %31 = arith.mulf %29, %30 : vector<16x128xf32>
      %32 = vector.broadcast %26 : vector<1x128xf32> to vector<16x128xf32>
      %33 = arith.addf %31, %32 : vector<16x128xf32>
      %cst_13 = arith.constant 0.000000e+00 : f32
      %34 = vector.broadcast %cst_13 : f32 to vector<16x128xf32>
      %35 = arith.maximumf %33, %34 : vector<16x128xf32>
      %36 = tpu.iota {dimensions = array<i32: 0>} : vector<16x1xi32>
      %c16_i32_14 = arith.constant 16 : i32
      %37 = arith.muli %arg1, %c16_i32_14 : i32
      %c20_i32 = arith.constant 20 : i32
      %38 = arith.subi %c20_i32, %37 : i32
      %39 = vector.broadcast %38 : i32 to vector<16x1xi32>
      %40 = arith.cmpi slt, %36, %39 : vector<16x1xi32>
      %cst_15 = arith.constant 0.000000e+00 : f32
      %41 = vector.shape_cast %40 : vector<16x1xi1> to vector<16x1xi1>
      %42 = vector.broadcast %41 : vector<16x1xi1> to vector<16x128xi1>
      %43 = vector.broadcast %cst_15 : f32 to vector<16x128xf32>
      %44 = arith.select %42, %35, %43 : vector<16x128xi1>, vector<16x128xf32>
      %45 = arith.truncf %44 : vector<16x128xf32> to vector<16x128xbf16>
      %c0_16 = arith.constant 0 : index
      %c0_17 = arith.constant 0 : index
      %46 = vector.load %arg4[%c0_16, %c0_17] : memref<128x128xbf16, #tpu.memory_space<vmem>>, vector<128x128xbf16>
      %cst_18 = arith.constant dense<0.000000e+00> : vector<16x128xf32>
      %47 = tpu.matmul %45, %46, %cst_18 {dimension_numbers = #tpu.dot_dimension_numbers<[1], [0], [0], [1], [0, 0, 1, 1], [], []>} : vector<16x128xbf16>, vector<128x128xbf16>, vector<16x128xf32> -> vector<16x128xf32>
      %c0_19 = arith.constant 0 : index
      %c0_20 = arith.constant 0 : index
      %48 = vector.load %arg13[%c0_19, %c0_20] : memref<1x128xf32, #tpu.memory_space<vmem>>, vector<1x128xf32>
      %cst_21 = arith.constant dense<0.000000e+00> : vector<128xf32>
      %49 = vector.multi_reduction <add>, %47, %cst_21 [0] : vector<16x128xf32> to vector<128xf32>
      %50 = vector.shape_cast %49 : vector<128xf32> to vector<1x128xf32>
      %51 = arith.addf %48, %50 : vector<1x128xf32>
      %c0_22 = arith.constant 0 : index
      %c0_23 = arith.constant 0 : index
      %52 = vector.load %arg13[%c0_22, %c0_23] : memref<1x128xf32, #tpu.memory_space<vmem>>, vector<1x128xf32>
      tpu.vector_store %arg13[%c0_22, %c0_23], %51 {strides = array<i32>} : memref<1x128xf32, #tpu.memory_space<vmem>>, vector<1x128xf32>,
      %c0_24 = arith.constant 0 : index
      %c0_25 = arith.constant 0 : index
      %53 = vector.load %arg14[%c0_24, %c0_25] : memref<1x128xf32, #tpu.memory_space<vmem>>, vector<1x128xf32>
      %54 = arith.mulf %47, %47 : vector<16x128xf32>
      %cst_26 = arith.constant dense<0.000000e+00> : vector<128xf32>
      %55 = vector.multi_reduction <add>, %54, %cst_26 [0] : vector<16x128xf32> to vector<128xf32>
      %56 = vector.shape_cast %55 : vector<128xf32> to vector<1x128xf32>
      %57 = arith.addf %53, %56 : vector<1x128xf32>
      %c0_27 = arith.constant 0 : index
      %c0_28 = arith.constant 0 : index
      %58 = vector.load %arg14[%c0_27, %c0_28] : memref<1x128xf32, #tpu.memory_space<vmem>>, vector<1x128xf32>
      tpu.vector_store %arg14[%c0_27, %c0_28], %57 {strides = array<i32>} : memref<1x128xf32, #tpu.memory_space<vmem>>, vector<1x128xf32>,
      %59 = arith.truncf %47 : vector<16x128xf32> to vector<16x128xbf16>
      %60 = arith.index_cast %1 : i32 to index
      %c0_29 = arith.constant 0 : index
      %61 = vector.load %arg10[%60, %c0_29] : memref<32x128xbf16, #tpu.memory_space<vmem>>, vector<16x128xbf16>
      tpu.vector_store %arg10[%60, %c0_29], %59 {strides = array<i32>} : memref<32x128xbf16, #tpu.memory_space<vmem>>, vector<16x128xbf16>,
    } else {
    }
    %c2_i32 = arith.constant 2 : i32
    %8 = arith.cmpi eq, %arg0, %c2_i32 : i32
    %9 = arith.extui %8 : i1 to i32
    %c0_i32_2 = arith.constant 0 : i32
    %10 = arith.cmpi ne, %9, %c0_i32_2 : i32
    scf.if %10 {
      %c0 = arith.constant 0 : index
      %c0_3 = arith.constant 0 : index
      %11 = vector.load %arg13[%c0, %c0_3] : memref<1x128xf32, #tpu.memory_space<vmem>>, vector<1x128xf32>
      %cst = arith.constant 5.000000e-02 : f32
      %12 = vector.broadcast %cst : f32 to vector<1x128xf32>
      %13 = arith.mulf %11, %12 : vector<1x128xf32>
      %c0_4 = arith.constant 0 : index
      %c0_5 = arith.constant 0 : index
      %14 = vector.load %arg14[%c0_4, %c0_5] : memref<1x128xf32, #tpu.memory_space<vmem>>, vector<1x128xf32>
      %cst_6 = arith.constant 5.000000e-02 : f32
      %15 = vector.broadcast %cst_6 : f32 to vector<1x128xf32>
      %16 = arith.mulf %14, %15 : vector<1x128xf32>
      %17 = arith.mulf %13, %13 : vector<1x128xf32>
      %18 = arith.subf %16, %17 : vector<1x128xf32>
      %c0_7 = arith.constant 0 : index
      %c0_8 = arith.constant 0 : index
      %19 = vector.load %arg7[%c0_7, %c0_8] : memref<1x128xf32, #tpu.memory_space<vmem>>, vector<1x128xf32>
      %cst_9 = arith.constant 9.99999974E-6 : f32
      %20 = vector.broadcast %cst_9 : f32 to vector<1x128xf32>
      %21 = arith.addf %18, %20 : vector<1x128xf32>
      %22 = math.rsqrt %21 : vector<1x128xf32>
      %23 = arith.mulf %19, %22 : vector<1x128xf32>
      %c0_10 = arith.constant 0 : index
      %c0_11 = arith.constant 0 : index
      %24 = vector.load %arg8[%c0_10, %c0_11] : memref<1x128xf32, #tpu.memory_space<vmem>>, vector<1x128xf32>
      %25 = arith.mulf %13, %23 : vector<1x128xf32>
      %26 = arith.subf %24, %25 : vector<1x128xf32>
      %27 = arith.index_cast %1 : i32 to index
      %c0_12 = arith.constant 0 : index
      %28 = vector.load %arg10[%27, %c0_12] : memref<32x128xbf16, #tpu.memory_space<vmem>>, vector<16x128xbf16>
      %29 = arith.extf %28 : vector<16x128xbf16> to vector<16x128xf32>
      %30 = vector.broadcast %23 : vector<1x128xf32> to vector<16x128xf32>
      %31 = arith.mulf %29, %30 : vector<16x128xf32>
      %32 = vector.broadcast %26 : vector<1x128xf32> to vector<16x128xf32>
      %33 = arith.addf %31, %32 : vector<16x128xf32>
      %cst_13 = arith.constant 0.000000e+00 : f32
      %34 = vector.broadcast %cst_13 : f32 to vector<16x128xf32>
      %35 = arith.maximumf %33, %34 : vector<16x128xf32>
      %36 = arith.truncf %35 : vector<16x128xf32> to vector<16x128xbf16>
      %c0_14 = arith.constant 0 : index
      %c0_15 = arith.constant 0 : index
      %37 = vector.load %arg5[%c0_14, %c0_15] : memref<128x128xbf16, #tpu.memory_space<vmem>>, vector<128x128xbf16>
      %cst_16 = arith.constant dense<0.000000e+00> : vector<16x128xf32>
      %38 = tpu.matmul %36, %37, %cst_16 {dimension_numbers = #tpu.dot_dimension_numbers<[1], [0], [0], [1], [0, 0, 1, 1], [], []>} : vector<16x128xbf16>, vector<128x128xbf16>, vector<16x128xf32> -> vector<16x128xf32>
      %c0_17 = arith.constant 0 : index
      %c0_18 = arith.constant 0 : index
      %39 = vector.load %arg6[%c0_17, %c0_18] : memref<1x128xf32, #tpu.memory_space<vmem>>, vector<1x128xf32>
      %40 = vector.broadcast %39 : vector<1x128xf32> to vector<16x128xf32>
      %41 = arith.addf %38, %40 : vector<16x128xf32>
      %c0_19 = arith.constant 0 : index
      %c0_20 = arith.constant 0 : index
      %42 = vector.load %arg9[%c0_19, %c0_20] : memref<16x128xf32, #tpu.memory_space<vmem>>, vector<16x128xf32>
      tpu.vector_store %arg9[%c0_19, %c0_20], %41 {strides = array<i32>} : memref<16x128xf32, #tpu.memory_space<vmem>>, vector<16x128xf32>,
    } else {
    }
    return
  }
  func.func @transform_0(%arg0: i32, %arg1: i32) -> (i32, i32) {
    %c0_i32 = arith.constant 0 : i32
    %0 = arith.cmpi eq, %arg0, %c0_i32 : i32
    %c1_i32 = arith.constant 1 : i32
    %1 = arith.select %0, %arg1, %c1_i32 : i32
    %c0_i32_0 = arith.constant 0 : i32
    %c0_i32_1 = arith.constant 0 : i32
    return %1, %c0_i32_0 : i32, i32
  }
  func.func @transform_1(%arg0: i32, %arg1: i32) -> (i32, i32) {
    %c0_i32 = arith.constant 0 : i32
    %c0_i32_0 = arith.constant 0 : i32
    %c0_i32_1 = arith.constant 0 : i32
    return %c0_i32, %c0_i32_0 : i32, i32
  }
  func.func @transform_2(%arg0: i32, %arg1: i32) -> (i32, i32) {
    %c0_i32 = arith.constant 0 : i32
    %c0_i32_0 = arith.constant 0 : i32
    %c0_i32_1 = arith.constant 0 : i32
    return %c0_i32, %c0_i32_0 : i32, i32
  }
  func.func @transform_3(%arg0: i32, %arg1: i32) -> (i32, i32) {
    %c0_i32 = arith.constant 0 : i32
    %c0_i32_0 = arith.constant 0 : i32
    %c0_i32_1 = arith.constant 0 : i32
    return %c0_i32, %c0_i32_0 : i32, i32
  }
  func.func @transform_4(%arg0: i32, %arg1: i32) -> (i32, i32) {
    %c0_i32 = arith.constant 0 : i32
    %c0_i32_0 = arith.constant 0 : i32
    %c0_i32_1 = arith.constant 0 : i32
    return %c0_i32, %c0_i32_0 : i32, i32
  }
  func.func @transform_5(%arg0: i32, %arg1: i32) -> (i32, i32) {
    %c0_i32 = arith.constant 0 : i32
    %c0_i32_0 = arith.constant 0 : i32
    %c0_i32_1 = arith.constant 0 : i32
    return %c0_i32, %c0_i32_0 : i32, i32
  }
  func.func @transform_6(%arg0: i32, %arg1: i32) -> (i32, i32) {
    %c0_i32 = arith.constant 0 : i32
    %c0_i32_0 = arith.constant 0 : i32
    %c0_i32_1 = arith.constant 0 : i32
    return %c0_i32, %c0_i32_0 : i32, i32
  }
  func.func @transform_7(%arg0: i32, %arg1: i32) -> (i32, i32) {
    %c2_i32 = arith.constant 2 : i32
    %0 = arith.cmpi eq, %arg0, %c2_i32 : i32
    %c0_i32 = arith.constant 0 : i32
    %1 = arith.select %0, %arg1, %c0_i32 : i32
    %c0_i32_0 = arith.constant 0 : i32
    %c0_i32_1 = arith.constant 0 : i32
    return %1, %c0_i32_0 : i32, i32
  }
}

</mosaic_0001>

<llo_original>
// kernel: tpu_custom_call.1
$region0: #{tpu_custom_call.1}
  #allocation0 [shape = 'u32[]', space=smem, size = 0x4, offset = 0x4, fixed_abs, tag = 'smem constant byte address 0x4 - core index']
  #allocation1 [shape = 'u32[144,128]{1,0:T(1,128)}', space=vmem, size = 0x12000, scoped, tag = 'internal scratch']
  #allocation2 [shape = 'bf16[32,128]{1,0:T(16,128)(2,1)}', space=vmem, size = 0x2000, scoped, tag = 'scratch operand']
  #allocation3 [shape = 'f32[1,128]{1,0:T(1,128)}', space=vmem, size = 0x200, scoped, tag = 'scratch operand']
  #allocation4 [shape = 'f32[1,128]{1,0:T(1,128)}', space=vmem, size = 0x200, scoped, tag = 'scratch operand']
  #allocation5 [shape = 'f32[1,128]{1,0:T(1,128)}', space=vmem, size = 0x200, scoped, tag = 'scratch operand']
  #allocation6 [shape = 'f32[1,128]{1,0:T(1,128)}', space=vmem, size = 0x200, scoped, tag = 'scratch operand']
  %s0 = inlined_call_operand.hbm [shape: f32[32,64], index: 0, kind: input, shape index: {}]
  %s1 = inlined_call_operand.hbm [shape: bf16[64,128], index: 1, kind: input, shape index: {}]
  %s2 = inlined_call_operand.hbm [shape: bf16[128,128], index: 2, kind: input, shape index: {}]
  %s3 = inlined_call_operand.hbm [shape: bf16[128,128], index: 3, kind: input, shape index: {}]
  %s4 = inlined_call_operand.vmem [shape: f32[1,128], index: 4, kind: input, shape index: {}]
  %s5 = inlined_call_operand.vmem [shape: f32[1,128], index: 5, kind: input, shape index: {}]
  %s6 = inlined_call_operand.vmem [shape: f32[1,128], index: 6, kind: input, shape index: {}]
  %s7 = inlined_call_operand.hbm [shape: f32[32,128], index: 7, kind: output, shape index: {}]
  %s8 = sld [smem:[#allocation0]]
  $region93: #{tpu_custom_call.1} parent=0
    _
  %s10 = ssub.s32 1, %s8
  %s11 = scalar_select 0, %s10, %s8
  $region1: #{tpu_custom_call.1} parent=0
    #allocation7 [shape = 'u8[16384]{0}', space=vmem, size = 0x4000, scoped, tag = 'input window, operand 0']
    #allocation8 [shape = 's32[2]{0}', space=sflag, size = 0x8, scoped, tag = 'scoped memory for tpu_custom_call.1']
    #allocation9 [shape = 's32[2]{0}', space=sflag, size = 0x8, scoped, tag = 'scoped memory for tpu_custom_call.1']
    #allocation10 [shape = 'u8[16384]{0}', space=vmem, size = 0x4000, scoped, tag = 'input window, operand 1, single buffered']
    #allocation11 [shape = 's32[1]{0}', space=sflag, size = 0x4, scoped, tag = 'scoped memory for tpu_custom_call.1']
    #allocation12 [shape = 'u8[32768]{0}', space=vmem, size = 0x8000, scoped, tag = 'input window, operand 2, single buffered']
    #allocation13 [shape = 'u8[32768]{0}', space=vmem, size = 0x8000, scoped, tag = 'input window, operand 3, single buffered']
    #allocation14 [shape = 's32[1]{0}', space=sflag, size = 0x4, scoped, tag = 'scoped memory for tpu_custom_call.1']
    #allocation15 [shape = 'u8[16384]{0}', space=vmem, size = 0x4000, scoped, tag = 'output window, operand 0']
    %12 = vsyncpa [#allocation8], 0
    %s13 = scalar_lea.sflag [#allocation8], 1
    %14 = vsyncpa %s13, 0
    %15 = vsyncpa [#allocation11], 0
    %16 = vsyncpa [#allocation14], 0
    %17 = vsyncpa [#allocation9], 0
    %s18 = scalar_lea.sflag [#allocation9], 1
    %19 = vsyncpa %s18, 0
    loop: start=0, step=1, limit=8
    $region2: #{tpu_custom_call.1} parent=1 // loop_pre_header
      _
    $region3: #{tpu_custom_call.1} parent=1 // loop_header
      %s21 = sphi 0, %s25
      %p22 = scmp.ge.s32.totalorder %s21, 8
      %s28 = sphi 0, %s40
      %s29 = sphi 0, %s36
      %s30 = sphi 0, %s28
      %s31 = sphi 0, %s29
      %s32 = sphi 0, %s30
      %s33 = sphi 0, %s31
      %s47 = sphi 0, %s49
      %s50 = sphi 0, %s47
      %s51 = sphi 0, %s50
      %s67 = sphi 0, %s51
      %s71 = sphi 0, %s71
      %s73 = sphi 0, %s71
      %s74 = sphi 0, %s73
      %s88 = sphi 0, %s74
      %s92 = sphi 0, %s92
      %s94 = sphi 0, %s92
      %s95 = sphi 0, %s94
      %s109 = sphi 0, %s95
      %s113 = sphi 0, %s113
      %s115 = sphi 0, %s113
      %s116 = sphi 0, %s115
      %s130 = sphi 0, %s116
      %s134 = sphi 0, %s134
      %s136 = sphi 0, %s134
      %s137 = sphi 0, %s136
      %s151 = sphi 0, %s137
      %s155 = sphi 0, %s155
      %s157 = sphi 0, %s155
      %s158 = sphi 0, %s157
      %s172 = sphi 0, %s158
      %s176 = sphi 0, %s176
      %s178 = sphi 0, %s176
      %s179 = sphi 0, %s178
      %s193 = sphi 0, %s179
      %s203 = sphi 0, %s205
      %s206 = sphi 0, %s203
      %s207 = sphi 0, %s206
      %s223 = sphi 0, %s207
    $region4: #{tpu_custom_call.1} parent=1 // loop_header_branch
      %24 = sbr.rel (%p22) target = $region8
    $region5: #{tpu_custom_call.1} parent=1 // loop_body
      %s26 = ssub.s32 %s21, 1
      %s27 = ssub.s32 %s21, 2
      %s34 = sadd.s32 1, %s29
      %p35 = scmp.ge.s32.totalorder %s34, 2
      %s36 = scalar_select %p35, 0, %s34
      %s37 = sadd.s32 1, %s28
      %s38 = scalar_select %p35, %s37, %s28
      %p39 = scmp.ge.s32.totalorder %s38, 3
      %s40 = scalar_select %p39, 0, %s38
      %p41 = scmp.eq.s32.totalorder %s28, 0
      %s42 = scalar_select %p41, %s29, 1
      %p43 = scmp.eq.s32.totalorder %s40, 0
      %s44 = scalar_select %p43, %s36, 1
      %s45 = ssub.s32 %s42, %s44
      %p46 = scmp.eq.s32.totalorder %s45, 0
      %s48 = sadd.s32 %s47, 1
      %s49 = scalar_select %p46, %s47, %s48
      %p52 = pneg %p46
      %p53 = scmp.eq.s32.totalorder %s21, 5
      %p54 = por %p52, %p53
      %p55 = scmp.ne.s32.totalorder %s47, %s50
      %p56 = scmp.eq.s32.totalorder %s21, 0
      %p57 = por %p55, %p56
      %p58 = scmp.ne.s32.totalorder %s47, %s50
      %p59 = scmp.eq.s32.totalorder %s26, 5
      %p60 = por %p58, %p59
      %p61 = scmp.ne.s32.totalorder %s50, %s51
      %p62 = scmp.eq.s32.totalorder %s26, 0
      %p63 = por %p61, %p62
      %p64 = scmp.ne.s32.totalorder %s50, %s51
      %p65 = scmp.eq.s32.totalorder %s27, 5
      %p66 = por %p64, %p65
      %p68 = scmp.ne.s32.totalorder %s51, %s67
      %p69 = scmp.eq.s32.totalorder %s27, 0
      %p70 = por %p68, %p69
      %s72 = sadd.s32 %s71, 1
      %p75 = scmp.eq.s32.totalorder %s21, 5
      %p76 = scmp.ne.s32.totalorder %s71, %s73
      %p77 = scmp.eq.s32.totalorder %s21, 0
      %p78 = por %p76, %p77
      %p79 = scmp.ne.s32.totalorder %s71, %s73
      %p80 = scmp.eq.s32.totalorder %s26, 5
      %p81 = por %p79, %p80
      %p82 = scmp.ne.s32.totalorder %s73, %s74
      %p83 = scmp.eq.s32.totalorder %s26, 0
      %p84 = por %p82, %p83
      %p85 = scmp.ne.s32.totalorder %s73, %s74
      %p86 = scmp.eq.s32.totalorder %s27, 5
      %p87 = por %p85, %p86
      %p89 = scmp.ne.s32.totalorder %s74, %s88
      %p90 = scmp.eq.s32.totalorder %s27, 0
      %p91 = por %p89, %p90
      %s93 = sadd.s32 %s92, 1
      %p96 = scmp.eq.s32.totalorder %s21, 5
      %p97 = scmp.ne.s32.totalorder %s92, %s94
      %p98 = scmp.eq.s32.totalorder %s21, 0
      %p99 = por %p97, %p98
      %p100 = scmp.ne.s32.totalorder %s92, %s94
      %p101 = scmp.eq.s32.totalorder %s26, 5
      %p102 = por %p100, %p101
      %p103 = scmp.ne.s32.totalorder %s94, %s95
      %p104 = scmp.eq.s32.totalorder %s26, 0
      %p105 = por %p103, %p104
      %p106 = scmp.ne.s32.totalorder %s94, %s95
      %p107 = scmp.eq.s32.totalorder %s27, 5
      %p108 = por %p106, %p107
      %p110 = scmp.ne.s32.totalorder %s95, %s109
      %p111 = scmp.eq.s32.totalorder %s27, 0
      %p112 = por %p110, %p111
      %s114 = sadd.s32 %s113, 1
      %p117 = scmp.eq.s32.totalorder %s21, 5
      %p118 = scmp.ne.s32.totalorder %s113, %s115
      %p119 = scmp.eq.s32.totalorder %s21, 0
      %p120 = por %p118, %p119
      %p121 = scmp.ne.s32.totalorder %s113, %s115
      %p122 = scmp.eq.s32.totalorder %s26, 5
      %p123 = por %p121, %p122
      %p124 = scmp.ne.s32.totalorder %s115, %s116
      %p125 = scmp.eq.s32.totalorder %s26, 0
      %p126 = por %p124, %p125
      %p127 = scmp.ne.s32.totalorder %s115, %s116
      %p128 = scmp.eq.s32.totalorder %s27, 5
      %p129 = por %p127, %p128
      %p131 = scmp.ne.s32.totalorder %s116, %s130
      %p132 = scmp.eq.s32.totalorder %s27, 0
      %p133 = por %p131, %p132
      %s135 = sadd.s32 %s134, 1
      %p138 = scmp.eq.s32.totalorder %s21, 5
      %p139 = scmp.ne.s32.totalorder %s134, %s136
      %p140 = scmp.eq.s32.totalorder %s21, 0
      %p141 = por %p139, %p140
      %p142 = scmp.ne.s32.totalorder %s134, %s136
      %p143 = scmp.eq.s32.totalorder %s26, 5
      %p144 = por %p142, %p143
      %p145 = scmp.ne.s32.totalorder %s136, %s137
      %p146 = scmp.eq.s32.totalorder %s26, 0
      %p147 = por %p145, %p146
      %p148 = scmp.ne.s32.totalorder %s136, %s137
      %p149 = scmp.eq.s32.totalorder %s27, 5
      %p150 = por %p148, %p149
      %p152 = scmp.ne.s32.totalorder %s137, %s151
      %p153 = scmp.eq.s32.totalorder %s27, 0
      %p154 = por %p152, %p153
      %s156 = sadd.s32 %s155, 1
      %p159 = scmp.eq.s32.totalorder %s21, 5
      %p160 = scmp.ne.s32.totalorder %s155, %s157
      %p161 = scmp.eq.s32.totalorder %s21, 0
      %p162 = por %p160, %p161
      %p163 = scmp.ne.s32.totalorder %s155, %s157
      %p164 = scmp.eq.s32.totalorder %s26, 5
      %p165 = por %p163, %p164
      %p166 = scmp.ne.s32.totalorder %s157, %s158
      %p167 = scmp.eq.s32.totalorder %s26, 0
      %p168 = por %p166, %p167
      %p169 = scmp.ne.s32.totalorder %s157, %s158
      %p170 = scmp.eq.s32.totalorder %s27, 5
      %p171 = por %p169, %p170
      %p173 = scmp.ne.s32.totalorder %s158, %s172
      %p174 = scmp.eq.s32.totalorder %s27, 0
      %p175 = por %p173, %p174
      %s177 = sadd.s32 %s176, 1
      %p180 = scmp.eq.s32.totalorder %s21, 5
      %p181 = scmp.ne.s32.totalorder %s176, %s178
      %p182 = scmp.eq.s32.totalorder %s21, 0
      %p183 = por %p181, %p182
      %p184 = scmp.ne.s32.totalorder %s176, %s178
      %p185 = scmp.eq.s32.totalorder %s26, 5
      %p186 = por %p184, %p185
      %p187 = scmp.ne.s32.totalorder %s178, %s179
      %p188 = scmp.eq.s32.totalorder %s26, 0
      %p189 = por %p187, %p188
      %p190 = scmp.ne.s32.totalorder %s178, %s179
      %p191 = scmp.eq.s32.totalorder %s27, 5
      %p192 = por %p190, %p191
      %p194 = scmp.ne.s32.totalorder %s179, %s193
      %p195 = scmp.eq.s32.totalorder %s27, 0
      %p196 = por %p194, %p195
      %p197 = scmp.eq.s32.totalorder %s28, 2
      %s198 = scalar_select %p197, %s29, 0
      %p199 = scmp.eq.s32.totalorder %s40, 2
      %s200 = scalar_select %p199, %s36, 0
      %s201 = ssub.s32 %s198, %s200
      %p202 = scmp.eq.s32.totalorder %s201, 0
      %s204 = sadd.s32 %s203, 1
      %s205 = scalar_select %p202, %s203, %s204
      %p208 = pneg %p202
      %p209 = scmp.eq.s32.totalorder %s21, 5
      %p210 = por %p208, %p209
      %p211 = scmp.ne.s32.totalorder %s203, %s206
      %p212 = scmp.eq.s32.totalorder %s21, 0
      %p213 = por %p211, %p212
      %p214 = scmp.ne.s32.totalorder %s203, %s206
      %p215 = scmp.eq.s32.totalorder %s26, 5
      %p216 = por %p214, %p215
      %p217 = scmp.ne.s32.totalorder %s206, %s207
      %p218 = scmp.eq.s32.totalorder %s26, 0
      %p219 = por %p217, %p218
      %p220 = scmp.ne.s32.totalorder %s206, %s207
      %p221 = scmp.eq.s32.totalorder %s27, 5
      %p222 = por %p220, %p221
      %p224 = scmp.ne.s32.totalorder %s207, %s223
      %p225 = scmp.eq.s32.totalorder %s27, 0
      %p226 = por %p224, %p225
      %p227 = scmp.le.s32.totalorder 1, %s21
      %p228 = scmp.lt.s32.totalorder %s21, 7
      %p229 = pnand %p227, %p228
      %p230 = pneg %p229
      // Predicated region
      $region9: #{tpu_custom_call.1} parent=5 // pred_check
        _
      $region10: #{tpu_custom_call.1} parent=5 // pred_check_branch
        %232 = sbr.rel (%p229) target = $region12
      $region11: #{tpu_custom_call.1} parent=5 // pred_region
        %s233 = ssub.s32 %s21, 1
        // Predicated region
        $region13: #{tpu_custom_call.1} parent=11 // pred_check
          %p234 = pneg %p84
        $region14: #{tpu_custom_call.1} parent=11 // pred_check_branch
          %236 = sbr.rel (%p234) target = $region16
        $region15: #{tpu_custom_call.1} parent=11 // pred_region
          %s238 = ssub.s32 512, 512
          %239 = vsyncadd [#allocation11], %s238
          %s240 = sshll.u32 [#allocation10], 4
          %s241 = int_to_ptr.vmem [resolvable:$true] %s240
          %246 = dma.hbm_to_vmem [thread:$0]  %s1, 512, %s241, [#allocation11], 64, 64, 4
        $region16: #{tpu_custom_call.1} parent=11 // pred_fallthru
          _
        // Predicated region
        $region17: #{tpu_custom_call.1} parent=11 // pred_check
          %p247 = pneg %p105
        $region18: #{tpu_custom_call.1} parent=11 // pred_check_branch
          %249 = sbr.rel (%p247) target = $region20
        $region19: #{tpu_custom_call.1} parent=11 // pred_region
          %s251 = ssub.s32 1024, 1024
          %252 = vsyncadd [#allocation11], %s251
          %s253 = sshll.u32 [#allocation12], 4
          %s254 = int_to_ptr.vmem [resolvable:$true] %s253
          %259 = dma.hbm_to_vmem [thread:$0]  %s2, 1024, %s254, [#allocation11], 64, 64, 4
        $region20: #{tpu_custom_call.1} parent=11 // pred_fallthru
          _
        // Predicated region
        $region21: #{tpu_custom_call.1} parent=11 // pred_check
          %p260 = pneg %p126
        $region22: #{tpu_custom_call.1} parent=11 // pred_check_branch
          %262 = sbr.rel (%p260) target = $region24
        $region23: #{tpu_custom_call.1} parent=11 // pred_region
          %s264 = ssub.s32 1024, 1024
          %265 = vsyncadd [#allocation14], %s264
          %s266 = sshll.u32 [#allocation13], 4
          %s267 = int_to_ptr.vmem [resolvable:$true] %s266
          %272 = dma.hbm_to_vmem [thread:$0]  %s3, 1024, %s267, [#allocation14], 64, 64, 4
        $region24: #{tpu_custom_call.1} parent=11 // pred_fallthru
          _
        // Predicated region
        $region25: #{tpu_custom_call.1} parent=11 // pred_check
          %p273 = pneg %p147
        $region26: #{tpu_custom_call.1} parent=11 // pred_check_branch
          %275 = sbr.rel (%p273) target = $region28
        $region27: #{tpu_custom_call.1} parent=11 // pred_region
          _
        $region28: #{tpu_custom_call.1} parent=11 // pred_fallthru
          _
        // Predicated region
        $region29: #{tpu_custom_call.1} parent=11 // pred_check
          %p276 = pneg %p168
        $region30: #{tpu_custom_call.1} parent=11 // pred_check_branch
          %278 = sbr.rel (%p276) target = $region32
        $region31: #{tpu_custom_call.1} parent=11 // pred_region
          _
        $region32: #{tpu_custom_call.1} parent=11 // pred_fallthru
          _
        // Predicated region
        $region33: #{tpu_custom_call.1} parent=11 // pred_check
          %p279 = pneg %p189
        $region34: #{tpu_custom_call.1} parent=11 // pred_check_branch
          %281 = sbr.rel (%p279) target = $region36
        $region35: #{tpu_custom_call.1} parent=11 // pred_region
          _
        $region36: #{tpu_custom_call.1} parent=11 // pred_fallthru
          _
      $region12: #{tpu_custom_call.1} parent=5 // pred_fallthru
        _
      %p282 = scmp.lt.s32.totalorder %s21, 6
      // Predicated region
      $region37: #{tpu_custom_call.1} parent=5 // pred_check
        %p283 = pneg %p282
      $region38: #{tpu_custom_call.1} parent=5 // pred_check_branch
        %285 = sbr.rel (%p283) target = $region40
      $region39: #{tpu_custom_call.1} parent=5 // pred_region
        // Predicated region
        $region41: #{tpu_custom_call.1} parent=39 // pred_check
          %p286 = pneg %p57
        $region42: #{tpu_custom_call.1} parent=39 // pred_check_branch
          %288 = sbr.rel (%p286) target = $region44
        $region43: #{tpu_custom_call.1} parent=39 // pred_region
          %s289 = sand.u32 %s47, 1
          %s290 = scalar_lea.sflag [#allocation8], %s289
          %s291 = sand.u32 %s47, 1
          %s292 = smul.addr %s291, 16
          %s293 = scalar_lea.vmem [#allocation7], %s292
          %p294 = scmp.eq.s32.totalorder %s28, 0
          %s295 = scalar_select %p294, %s29, 1
          %s296 = smul.u32 2, %s295
          %s298 = ssub.s32 256, 256
          %299 = vsyncadd %s290, %s298
          %s300 = smul.addr %s296, 128
          %s301 = scalar_lea.hbm %s0, %s300
          %s302 = sshll.u32 %s293, 4
          %s303 = int_to_ptr.vmem [resolvable:$true] %s302
          %308 = dma.hbm_to_vmem [thread:$0]  %s301, 256, %s303, %s290, 128, 128, 8
        $region44: #{tpu_custom_call.1} parent=39 // pred_fallthru
          _
      $region40: #{tpu_custom_call.1} parent=5 // pred_fallthru
        _
      %p309 = scmp.le.s32.totalorder 1, %s21
      %p310 = scmp.lt.s32.totalorder %s21, 7
      %p311 = pnand %p309, %p310
      %p312 = pneg %p311
      // Predicated region
      $region45: #{tpu_custom_call.1} parent=5 // pred_check
        _
      $region46: #{tpu_custom_call.1} parent=5 // pred_check_branch
        %314 = sbr.rel (%p311) target = $region48
      $region47: #{tpu_custom_call.1} parent=5 // pred_region
        %s315 = ssub.s32 %s21, 1
        %s316 = sand.u32 %s50, 1
        %s317 = scalar_lea.sflag [#allocation8], %s316
        %s318 = sand.u32 %s50, 1
        %s319 = smul.addr %s318, 16
        %s320 = scalar_lea.vmem [#allocation7], %s319
        // Predicated region
        $region49: #{tpu_custom_call.1} parent=47 // pred_check
          %p321 = pneg %p63
        $region50: #{tpu_custom_call.1} parent=47 // pred_check_branch
          %323 = sbr.rel (%p321) target = $region52
        $region51: #{tpu_custom_call.1} parent=47 // pred_region
          %324 = dma.done %s317, 256
        $region52: #{tpu_custom_call.1} parent=47 // pred_fallthru
          _
        // Predicated region
        $region53: #{tpu_custom_call.1} parent=47 // pred_check
          %p325 = pneg %p84
        $region54: #{tpu_custom_call.1} parent=47 // pred_check_branch
          %327 = sbr.rel (%p325) target = $region56
        $region55: #{tpu_custom_call.1} parent=47 // pred_region
          %328 = dma.done [#allocation11], 512
        $region56: #{tpu_custom_call.1} parent=47 // pred_fallthru
          _
        // Predicated region
        $region57: #{tpu_custom_call.1} parent=47 // pred_check
          %p329 = pneg %p105
        $region58: #{tpu_custom_call.1} parent=47 // pred_check_branch
          %331 = sbr.rel (%p329) target = $region60
        $region59: #{tpu_custom_call.1} parent=47 // pred_region
          %332 = dma.done [#allocation11], 1024
        $region60: #{tpu_custom_call.1} parent=47 // pred_fallthru
          _
        // Predicated region
        $region61: #{tpu_custom_call.1} parent=47 // pred_check
          %p333 = pneg %p126
        $region62: #{tpu_custom_call.1} parent=47 // pred_check_branch
          %335 = sbr.rel (%p333) target = $region64
        $region63: #{tpu_custom_call.1} parent=47 // pred_region
          %336 = dma.done [#allocation14], 1024
        $region64: #{tpu_custom_call.1} parent=47 // pred_fallthru
          _
        %s337 = sand.u32 %s50, 1
        %s338 = scalar_lea.sflag [#allocation8], %s337
        %s339 = sand.u32 %s50, 1
        %s340 = smul.addr %s339, 16
        %s341 = scalar_lea.vmem [#allocation7], %s340
        %p342 = pneg %p63
        %p343 = pneg %p60
        %p344 = pneg %p84
        %p345 = pneg %p81
        %p346 = pneg %p105
        %p347 = pneg %p102
        %p348 = pneg %p126
        %p349 = pneg %p123
        %p350 = pneg %p147
        %p351 = pneg %p144
        %p352 = pneg %p168
        %p353 = pneg %p165
        %p354 = pneg %p189
        %p355 = pneg %p186
        %p356 = pneg %p219
        %p357 = pneg %p216
        %s358 = sand.u32 %s206, 1
        %s359 = scalar_lea.sflag [#allocation9], %s358
        %s360 = sand.u32 %s206, 1
        %s361 = smul.addr %s360, 16
        %s362 = scalar_lea.vmem [#allocation15], %s361
        %p363 = scmp.eq.s32.totalorder %s30, 0
        %s364 = scalar_select %p363, %s31, 1
        %s365 = smul.u32 2, %s364
        %p366 = scmp.eq.s32.totalorder %s30, 2
        %s367 = scalar_select %p366, %s31, 0
        %s368 = smul.u32 2, %s367
        %s370 = smul.u32 %s31, 16
        %p371 = scmp.eq.s32.totalorder %s30, 0
        // Predicated region
        $region65: #{tpu_custom_call.1} parent=47 // pred_check
          %p372 = pneg %p371
        $region66: #{tpu_custom_call.1} parent=47 // pred_check_branch
          %374 = sbr.rel (%p372) target = $region68
        $region67: #{tpu_custom_call.1} parent=47 // pred_region
          %p375 = scmp.eq.s32.totalorder %s31, 0
          // Predicated region
          $region69: #{tpu_custom_call.1} parent=67 // pred_check
            %p376 = pneg %p375
          $region70: #{tpu_custom_call.1} parent=67 // pred_check_branch
            %378 = sbr.rel (%p376) target = $region72
          $region71: #{tpu_custom_call.1} parent=67 // pred_region
            %379 = vst [vmem:[#allocation3] sm:$0x1] 0.0
            %380 = vst [vmem:[#allocation4] sm:$0x1] 0.0
            %381 = vst [vmem:[#allocation5] sm:$0x1] 0.0
            %382 = vst [vmem:[#allocation6] sm:$0x1] 0.0
          $region72: #{tpu_custom_call.1} parent=67 // pred_fallthru
            _
          %v383 = vld [vmem:[%s320] sm:$0xff]
          %v384 = vld [vmem:[%s320 + $0x8] sm:$0xff]
          %v385 = vpack.c.bf16 %v384, %v383
          %v386 = vld [vmem:[#allocation10] sm:$0xf]
          %v387 = vld [vmem:[#allocation10 + $0x4] sm:$0xf]
          %v388 = vld [vmem:[#allocation10 + $0x8] sm:$0xf]
          %v389 = vld [vmem:[#allocation10 + $0xc] sm:$0xf]
          %v390 = vld [vmem:[#allocation10 + $0x10] sm:$0xf]
          %v391 = vld [vmem:[#allocation10 + $0x14] sm:$0xf]
          %v392 = vld [vmem:[#allocation10 + $0x18] sm:$0xf]
          %v393 = vld [vmem:[#allocation10 + $0x1c] sm:$0xf]
          %v402 = vunpack.c.l.b16 %v386
          %v403 = vunpack.c.l.b16 %v387
          %v404 = vunpack.c.l.b16 %v388
          %v405 = vunpack.c.l.b16 %v389
          %v406 = vunpack.c.l.b16 %v390
          %v407 = vunpack.c.l.b16 %v391
          %v408 = vunpack.c.l.b16 %v392
          %v409 = vunpack.c.l.b16 %v393
          %v410 = vpack.c.b16 %v403, %v402
          %v411 = vpack.c.b16 %v405, %v404
          %v412 = vpack.c.b16 %v407, %v406
          %v413 = vpack.c.b16 %v409, %v408
          %vm418 = vcmask 523264
          %v420 = vsel %vm418, %v385, 0
          %422 = vmatprep.subr.bf16.mxu0 0
          %423 = vmatpush1.bf16.msra.mxu0 %v410
          %424 = vmatprep.subr.bf16.mxu0 0
          %425 = vmatpush1.bf16.msra.mxu0 %v411
          %426 = vmatprep.subr.bf16.mxu0 0
          %427 = vmatpush1.bf16.msra.mxu0 %v412
          %428 = vmatprep.subr.bf16.mxu0 0
          %429 = vmatpush1.bf16.msra.mxu0 %v413
          %430 = vmatprep.subr.bf16.mxu0 0
          %431 = vmatpush1.bf16.msra.mxu0 0
          %432 = vmatprep.subr.bf16.mxu0 0
          %433 = vmatpush1.bf16.msra.mxu0 0
          %434 = vmatprep.subr.bf16.mxu0 0
          %435 = vmatpush1.bf16.msra.mxu0 0
          %436 = vmatprep.subr.bf16.mxu0 0
          %437 = vmatpush1.bf16.msra.mxu0 0
          %438 = vmatprep.subr.bf16.mxu0 0
          %439 = vmatpush1.bf16.msra.mxu0 0
          %440 = vmatprep.subr.bf16.mxu0 0
          %441 = vmatpush1.bf16.msra.mxu0 0
          %442 = vmatprep.subr.bf16.mxu0 0
          %443 = vmatpush1.bf16.msra.mxu0 0
          %444 = vmatprep.subr.bf16.mxu0 0
          %445 = vmatpush1.bf16.msra.mxu0 0
          %446 = vmatprep.subr.bf16.mxu0 0
          %447 = vmatpush1.bf16.msra.mxu0 0
          %448 = vmatprep.subr.bf16.mxu0 0
          %449 = vmatpush1.bf16.msra.mxu0 0
          %450 = vmatprep.subr.bf16.mxu0 0
          %451 = vmatpush1.bf16.msra.mxu0 0
          %452 = vmatprep.subr.bf16.mxu0 0
          %453 = vmatpush1.bf16.msra.mxu0 0
          %454 = vmatprep.mubr.bf16.mxu0 0
          %455 = vmatmul.mubr.bf16.gmra.mrb[0].mxu0 %v420
          %v456 = vpop.f32.mrb[0].mxu0
          %v457 = vadd.f32 0.0, %v456
          %v458 = vpop.f32.mrb[0].mxu0
          %v459 = vpop.f32.mrb[0].mxu0
          %v460 = vadd.f32 0.0, %v459
          %v461 = vpop.f32.mrb[0].mxu0
          %462 = vdwg.mxu0
          %v463 = vld [vmem:[#allocation3] sm:$0x1]
          %v464 = vadd.f32 %v457, %v460
          %v465 = vrot.slane %v464, 4
          %v466 = vadd.f32 %v464, %v465
          %v467 = vrot.slane %v466, 2
          %v468 = vadd.f32 %v466, %v467
          %v469 = vrot.slane %v468, 1
          %v470 = vadd.f32 %v468, %v469
          %v471 = vadd.f32 %v463, %v470
          %472 = vst [vmem:[#allocation3] sm:$0x1] %v471
          %v473 = vld [vmem:[#allocation4] sm:$0x1]
          %v474 = vmul.f32 %v457, %v457
          %v475 = vmul.f32 %v460, %v460
          %v476 = vadd.f32 %v474, %v475
          %v477 = vrot.slane %v476, 4
          %v478 = vadd.f32 %v476, %v477
          %v479 = vrot.slane %v478, 2
          %v480 = vadd.f32 %v478, %v479
          %v481 = vrot.slane %v480, 1
          %v482 = vadd.f32 %v480, %v481
          %v483 = vadd.f32 %v473, %v482
          %484 = vst [vmem:[#allocation4] sm:$0x1] %v483
          %v485 = vpack.c.bf16 %v460, %v457
          %s486 = sshra.s32 %s370, 4
          %s487 = sand.u32 %s370, 15
          %s488 = smul.addr %s486, 8
          %s489 = scalar_lea.vmem [#allocation2], %s488
          %490 = vst [vmem:[%s489] sm:$0xff] %v485
        $region68: #{tpu_custom_call.1} parent=47 // pred_fallthru
          _
        %p491 = scmp.eq.s32.totalorder %s30, 1
        // Predicated region
        $region73: #{tpu_custom_call.1} parent=47 // pred_check
          %p492 = pneg %p491
        $region74: #{tpu_custom_call.1} parent=47 // pred_check_branch
          %494 = sbr.rel (%p492) target = $region76
        $region75: #{tpu_custom_call.1} parent=47 // pred_region
          %v495 = vld [vmem:[#allocation3] sm:$0x1]
          %v496 = vmul.f32 %v495, 0.05
          %v497 = vld [vmem:[#allocation4] sm:$0x1]
          %v498 = vmul.f32 %v497, 0.05
          %v499 = vmul.f32 %v496, %v496
          %v500 = vsub.f32 %v498, %v499
          %v501 = vld [vmem:[%s5] sm:$0x1]
          %v502 = vadd.f32 %v500, 1e-05
          %v503 = vrsqrt.pop %v502
          %v504 = vmul.f32 %v501, %v503
          %v505 = vld [vmem:[%s6] sm:$0x1]
          %v506 = vmul.f32 %v496, %v504
          %v507 = vsub.f32 %v505, %v506
          %s508 = sshra.s32 %s370, 4
          %s509 = sand.u32 %s370, 15
          %s510 = smul.addr %s508, 8
          %s511 = scalar_lea.vmem [#allocation2], %s510
          %v512 = vld [vmem:[%s511] sm:$0xff]
          %v513 = vunpack.c.l.bf16 %v512
          %v514 = vunpack.c.h.bf16 %v512
          %v516 = vlaneseq
          %v517 = vshrl.u32 %v516, 7
          %v518 = vsub.s32 0, %v517
          %v519 = vrot.slane %v504, %v518
          %v521 = vmul.f32 %v513, %v519
          %v522 = vmul.f32 %v514, %v519
          %v524 = vlaneseq
          %v525 = vshrl.u32 %v524, 7
          %v526 = vsub.s32 0, %v525
          %v527 = vrot.slane %v507, %v526
          %v529 = vadd.f32 %v521, %v527
          %v530 = vadd.f32 %v522, %v527
          %v531 = vmax.f32 %v529, 0.0
          %v532 = vmax.f32 %v530, 0.0
          %v533 = vlaneseq
          %v534 = vshrl.u32 %v533, 7
          %v535 = vadd.s32 %v534, 8
          %s536 = ssub.s32 20, %s370
          %v537 = vstv %s536
          %vm538 = vcmp.lt.s32.totalorder %v534, %v537
          %vm539 = vcmp.lt.s32.totalorder %v535, %v537
          %v540 = vsel %vm538, 1, 0
          %v541 = vsel %vm539, 1, 0
          %vm542 = vcmp.eq.s32.totalorder %v540, 1
          %vm543 = vcmp.eq.s32.totalorder %v541, 1
          %v544 = vsel %vm542, %v531, 0.0
          %v545 = vsel %vm543, %v532, 0.0
          %v546 = vpack.c.bf16 %v545, %v544
          %v547 = vld [vmem:[#allocation12] sm:$0xf]
          %v548 = vld [vmem:[#allocation12 + $0x4] sm:$0xf]
          %v549 = vld [vmem:[#allocation12 + $0x8] sm:$0xf]
          %v550 = vld [vmem:[#allocation12 + $0xc] sm:$0xf]
          %v551 = vld [vmem:[#allocation12 + $0x10] sm:$0xf]
          %v552 = vld [vmem:[#allocation12 + $0x14] sm:$0xf]
          %v553 = vld [vmem:[#allocation12 + $0x18] sm:$0xf]
          %v554 = vld [vmem:[#allocation12 + $0x1c] sm:$0xf]
          %v555 = vld [vmem:[#allocation12 + $0x20] sm:$0xf]
          %v556 = vld [vmem:[#allocation12 + $0x24] sm:$0xf]
          %v557 = vld [vmem:[#allocation12 + $0x28] sm:$0xf]
          %v558 = vld [vmem:[#allocation12 + $0x2c] sm:$0xf]
          %v559 = vld [vmem:[#allocation12 + $0x30] sm:$0xf]
          %v560 = vld [vmem:[#allocation12 + $0x34] sm:$0xf]
          %v561 = vld [vmem:[#allocation12 + $0x38] sm:$0xf]
          %v562 = vld [vmem:[#allocation12 + $0x3c] sm:$0xf]
          %v579 = vunpack.c.l.b16 %v547
          %v580 = vunpack.c.l.b16 %v548
          %v581 = vunpack.c.l.b16 %v549
          %v582 = vunpack.c.l.b16 %v550
          %v583 = vunpack.c.l.b16 %v551
          %v584 = vunpack.c.l.b16 %v552
          %v585 = vunpack.c.l.b16 %v553
          %v586 = vunpack.c.l.b16 %v554
          %v587 = vunpack.c.l.b16 %v555
          %v588 = vunpack.c.l.b16 %v556
          %v589 = vunpack.c.l.b16 %v557
          %v590 = vunpack.c.l.b16 %v558
          %v591 = vunpack.c.l.b16 %v559
          %v592 = vunpack.c.l.b16 %v560
          %v593 = vunpack.c.l.b16 %v561
          %v594 = vunpack.c.l.b16 %v562
          %v595 = vpack.c.b16 %v580, %v579
          %v596 = vpack.c.b16 %v582, %v581
          %v597 = vpack.c.b16 %v584, %v583
          %v598 = vpack.c.b16 %v586, %v585
          %v599 = vpack.c.b16 %v588, %v587
          %v600 = vpack.c.b16 %v590, %v589
          %v601 = vpack.c.b16 %v592, %v591
          %v602 = vpack.c.b16 %v594, %v593
          %611 = vmatprep.subr.bf16.mxu0 0
          %612 = vmatpush1.bf16.msra.mxu0 %v595
          %613 = vmatprep.subr.bf16.mxu0 0
          %614 = vmatpush1.bf16.msra.mxu0 %v596
          %615 = vmatprep.subr.bf16.mxu0 0
          %616 = vmatpush1.bf16.msra.mxu0 %v597
          %617 = vmatprep.subr.bf16.mxu0 0
          %618 = vmatpush1.bf16.msra.mxu0 %v598
          %619 = vmatprep.subr.bf16.mxu0 0
          %620 = vmatpush1.bf16.msra.mxu0 %v599
          %621 = vmatprep.subr.bf16.mxu0 0
          %622 = vmatpush1.bf16.msra.mxu0 %v600
          %623 = vmatprep.subr.bf16.mxu0 0
          %624 = vmatpush1.bf16.msra.mxu0 %v601
          %625 = vmatprep.subr.bf16.mxu0 0
          %626 = vmatpush1.bf16.msra.mxu0 %v602
          %627 = vmatprep.subr.bf16.mxu0 0
          %628 = vmatpush1.bf16.msra.mxu0 0
          %629 = vmatprep.subr.bf16.mxu0 0
          %630 = vmatpush1.bf16.msra.mxu0 0
          %631 = vmatprep.subr.bf16.mxu0 0
          %632 = vmatpush1.bf16.msra.mxu0 0
          %633 = vmatprep.subr.bf16.mxu0 0
          %634 = vmatpush1.bf16.msra.mxu0 0
          %635 = vmatprep.subr.bf16.mxu0 0
          %636 = vmatpush1.bf16.msra.mxu0 0
          %637 = vmatprep.subr.bf16.mxu0 0
          %638 = vmatpush1.bf16.msra.mxu0 0
          %639 = vmatprep.subr.bf16.mxu0 0
          %640 = vmatpush1.bf16.msra.mxu0 0
          %641 = vmatprep.subr.bf16.mxu0 0
          %642 = vmatpush1.bf16.msra.mxu0 0
          %643 = vmatprep.mubr.bf16.mxu0 0
          %644 = vmatmul.mubr.bf16.gmra.mrb[0].mxu0 %v546
          %v645 = vpop.f32.mrb[0].mxu0
          %v646 = vadd.f32 0.0, %v645
          %v647 = vpop.f32.mrb[0].mxu0
          %v648 = vpop.f32.mrb[0].mxu0
          %v649 = vadd.f32 0.0, %v648
          %v650 = vpop.f32.mrb[0].mxu0
          %651 = vdwg.mxu0
          %v652 = vld [vmem:[#allocation5] sm:$0x1]
          %v653 = vadd.f32 %v646, %v649
          %v654 = vrot.slane %v653, 4
          %v655 = vadd.f32 %v653, %v654
          %v656 = vrot.slane %v655, 2
          %v657 = vadd.f32 %v655, %v656
          %v658 = vrot.slane %v657, 1
          %v659 = vadd.f32 %v657, %v658
          %v660 = vadd.f32 %v652, %v659
          %661 = vst [vmem:[#allocation5] sm:$0x1] %v660
          %v662 = vld [vmem:[#allocation6] sm:$0x1]
          %v663 = vmul.f32 %v646, %v646
          %v664 = vmul.f32 %v649, %v649
          %v665 = vadd.f32 %v663, %v664
          %v666 = vrot.slane %v665, 4
          %v667 = vadd.f32 %v665, %v666
          %v668 = vrot.slane %v667, 2
          %v669 = vadd.f32 %v667, %v668
          %v670 = vrot.slane %v669, 1
          %v671 = vadd.f32 %v669, %v670
          %v672 = vadd.f32 %v662, %v671
          %673 = vst [vmem:[#allocation6] sm:$0x1] %v672
          %v674 = vpack.c.bf16 %v649, %v646
          %675 = vst [vmem:[%s511] sm:$0xff] %v674
        $region76: #{tpu_custom_call.1} parent=47 // pred_fallthru
          _
        %p676 = scmp.eq.s32.totalorder %s30, 2
        // Predicated region
        $region77: #{tpu_custom_call.1} parent=47 // pred_check
          %p677 = pneg %p676
        $region78: #{tpu_custom_call.1} parent=47 // pred_check_branch
          %679 = sbr.rel (%p677) target = $region80
        $region79: #{tpu_custom_call.1} parent=47 // pred_region
          %v680 = vld [vmem:[#allocation5] sm:$0x1]
          %v681 = vmul.f32 %v680, 0.05
          %v682 = vld [vmem:[#allocation6] sm:$0x1]
          %v683 = vmul.f32 %v682, 0.05
          %v684 = vmul.f32 %v681, %v681
          %v685 = vsub.f32 %v683, %v684
          %v686 = vld [vmem:[%s5] sm:$0x1]
          %v687 = vadd.f32 %v685, 1e-05
          %v688 = vrsqrt.pop %v687
          %v689 = vmul.f32 %v686, %v688
          %v690 = vld [vmem:[%s6] sm:$0x1]
          %v691 = vmul.f32 %v681, %v689
          %v692 = vsub.f32 %v690, %v691
          %s693 = sshra.s32 %s370, 4
          %s694 = sand.u32 %s370, 15
          %s695 = smul.addr %s693, 8
          %s696 = scalar_lea.vmem [#allocation2], %s695
          %v697 = vld [vmem:[%s696] sm:$0xff]
          %v698 = vunpack.c.l.bf16 %v697
          %v699 = vunpack.c.h.bf16 %v697
          %v701 = vlaneseq
          %v702 = vshrl.u32 %v701, 7
          %v703 = vsub.s32 0, %v702
          %v704 = vrot.slane %v689, %v703
          %v706 = vmul.f32 %v698, %v704
          %v707 = vmul.f32 %v699, %v704
          %v709 = vlaneseq
          %v710 = vshrl.u32 %v709, 7
          %v711 = vsub.s32 0, %v710
          %v712 = vrot.slane %v692, %v711
          %v714 = vadd.f32 %v706, %v712
          %v715 = vadd.f32 %v707, %v712
          %v716 = vmax.f32 %v714, 0.0
          %v717 = vmax.f32 %v715, 0.0
          %v718 = vpack.c.bf16 %v717, %v716
          %v719 = vld [vmem:[#allocation13] sm:$0xf]
          %v720 = vld [vmem:[#allocation13 + $0x4] sm:$0xf]
          %v721 = vld [vmem:[#allocation13 + $0x8] sm:$0xf]
          %v722 = vld [vmem:[#allocation13 + $0xc] sm:$0xf]
          %v723 = vld [vmem:[#allocation13 + $0x10] sm:$0xf]
          %v724 = vld [vmem:[#allocation13 + $0x14] sm:$0xf]
          %v725 = vld [vmem:[#allocation13 + $0x18] sm:$0xf]
          %v726 = vld [vmem:[#allocation13 + $0x1c] sm:$0xf]
          %v727 = vld [vmem:[#allocation13 + $0x20] sm:$0xf]
          %v728 = vld [vmem:[#allocation13 + $0x24] sm:$0xf]
          %v729 = vld [vmem:[#allocation13 + $0x28] sm:$0xf]
          %v730 = vld [vmem:[#allocation13 + $0x2c] sm:$0xf]
          %v731 = vld [vmem:[#allocation13 + $0x30] sm:$0xf]
          %v732 = vld [vmem:[#allocation13 + $0x34] sm:$0xf]
          %v733 = vld [vmem:[#allocation13 + $0x38] sm:$0xf]
          %v734 = vld [vmem:[#allocation13 + $0x3c] sm:$0xf]
          %v735 = vld [vmem:[%s4] sm:$0x1]
          %v737 = vlaneseq
          %v738 = vshrl.u32 %v737, 7
          %v739 = vsub.s32 0, %v738
          %v740 = vrot.slane %v735, %v739
          %v758 = vunpack.c.l.b16 %v719
          %v759 = vunpack.c.l.b16 %v720
          %v760 = vunpack.c.l.b16 %v721
          %v761 = vunpack.c.l.b16 %v722
          %v762 = vunpack.c.l.b16 %v723
          %v763 = vunpack.c.l.b16 %v724
          %v764 = vunpack.c.l.b16 %v725
          %v765 = vunpack.c.l.b16 %v726
          %v766 = vunpack.c.l.b16 %v727
          %v767 = vunpack.c.l.b16 %v728
          %v768 = vunpack.c.l.b16 %v729
          %v769 = vunpack.c.l.b16 %v730
          %v770 = vunpack.c.l.b16 %v731
          %v771 = vunpack.c.l.b16 %v732
          %v772 = vunpack.c.l.b16 %v733
          %v773 = vunpack.c.l.b16 %v734
          %v774 = vpack.c.b16 %v759, %v758
          %v775 = vpack.c.b16 %v761, %v760
          %v776 = vpack.c.b16 %v763, %v762
          %v777 = vpack.c.b16 %v765, %v764
          %v778 = vpack.c.b16 %v767, %v766
          %v779 = vpack.c.b16 %v769, %v768
          %v780 = vpack.c.b16 %v771, %v770
          %v781 = vpack.c.b16 %v773, %v772
          %790 = vmatprep.subr.bf16.mxu0 0
          %791 = vmatpush1.bf16.msra.mxu0 %v774
          %792 = vmatprep.subr.bf16.mxu0 0
          %793 = vmatpush1.bf16.msra.mxu0 %v775
          %794 = vmatprep.subr.bf16.mxu0 0
          %795 = vmatpush1.bf16.msra.mxu0 %v776
          %796 = vmatprep.subr.bf16.mxu0 0
          %797 = vmatpush1.bf16.msra.mxu0 %v777
          %798 = vmatprep.subr.bf16.mxu0 0
          %799 = vmatpush1.bf16.msra.mxu0 %v778
          %800 = vmatprep.subr.bf16.mxu0 0
          %801 = vmatpush1.bf16.msra.mxu0 %v779
          %802 = vmatprep.subr.bf16.mxu0 0
          %803 = vmatpush1.bf16.msra.mxu0 %v780
          %804 = vmatprep.subr.bf16.mxu0 0
          %805 = vmatpush1.bf16.msra.mxu0 %v781
          %806 = vmatprep.subr.bf16.mxu0 0
          %807 = vmatpush1.bf16.msra.mxu0 0
          %808 = vmatprep.subr.bf16.mxu0 0
          %809 = vmatpush1.bf16.msra.mxu0 0
          %810 = vmatprep.subr.bf16.mxu0 0
          %811 = vmatpush1.bf16.msra.mxu0 0
          %812 = vmatprep.subr.bf16.mxu0 0
          %813 = vmatpush1.bf16.msra.mxu0 0
          %814 = vmatprep.subr.bf16.mxu0 0
          %815 = vmatpush1.bf16.msra.mxu0 0
          %816 = vmatprep.subr.bf16.mxu0 0
          %817 = vmatpush1.bf16.msra.mxu0 0
          %818 = vmatprep.subr.bf16.mxu0 0
          %819 = vmatpush1.bf16.msra.mxu0 0
          %820 = vmatprep.subr.bf16.mxu0 0
          %821 = vmatpush1.bf16.msra.mxu0 0
          %822 = vmatprep.mubr.bf16.mxu0 0
          %823 = vmatmul.mubr.bf16.gmra.mrb[0].mxu0 %v718
          %v824 = vpop.f32.mrb[0].mxu0
          %v825 = vadd.f32 %v740, %v824
          %v826 = vpop.f32.mrb[0].mxu0
          %v827 = vpop.f32.mrb[0].mxu0
          %v828 = vadd.f32 %v740, %v827
          %v829 = vpop.f32.mrb[0].mxu0
          %830 = vdwg.mxu0
          %831 = vst [vmem:[%s362] sm:$0xff] %v825
          %832 = vst [vmem:[%s362 + $0x8] sm:$0xff] %v828
        $region80: #{tpu_custom_call.1} parent=47 // pred_fallthru
          _
        %s833 = sand.u32 %s206, 1
        %s834 = scalar_lea.sflag [#allocation9], %s833
        %s835 = sand.u32 %s206, 1
        %s836 = smul.addr %s835, 16
        %s837 = scalar_lea.vmem [#allocation15], %s836
        // Predicated region
        $region81: #{tpu_custom_call.1} parent=47 // pred_check
          %p838 = pneg %p216
        $region82: #{tpu_custom_call.1} parent=47 // pred_check_branch
          %840 = sbr.rel (%p838) target = $region84
        $region83: #{tpu_custom_call.1} parent=47 // pred_region
          %p841 = scmp.eq.s32.totalorder %s30, 2
          %s842 = scalar_select %p841, %s31, 0
          %s843 = smul.u32 2, %s842
          %s845 = ssub.s32 256, 256
          %846 = vsyncadd %s834, %s845
          %s847 = smul.addr %s843, 128
          %s848 = scalar_lea.hbm %s7, %s847
          %s849 = sshll.u32 %s837, 4
          %s850 = int_to_ptr.vmem [resolvable:$true] %s849
          %855 = dma.vmem_to_hbm [thread:$0]  %s850, 256, %s848, %s834, 128, 128, 8
        $region84: #{tpu_custom_call.1} parent=47 // pred_fallthru
          _
      $region48: #{tpu_custom_call.1} parent=5 // pred_fallthru
        _
      %p856 = scmp.le.s32.totalorder 2, %s21
      // Predicated region
      $region85: #{tpu_custom_call.1} parent=5 // pred_check
        %p857 = pneg %p856
      $region86: #{tpu_custom_call.1} parent=5 // pred_check_branch
        %859 = sbr.rel (%p857) target = $region88
      $region87: #{tpu_custom_call.1} parent=5 // pred_region
        %s860 = ssub.s32 %s21, 2
        // Predicated region
        $region89: #{tpu_custom_call.1} parent=87 // pred_check
          %p861 = pneg %p222
        $region90: #{tpu_custom_call.1} parent=87 // pred_check_branch
          %863 = sbr.rel (%p861) target = $region92
        $region91: #{tpu_custom_call.1} parent=87 // pred_region
          %s864 = sand.u32 %s207, 1
          %s865 = scalar_lea.sflag [#allocation9], %s864
          %s866 = sand.u32 %s207, 1
          %s867 = smul.addr %s866, 16
          %s868 = scalar_lea.vmem [#allocation15], %s867
          %869 = dma.done %s865, 256
        $region92: #{tpu_custom_call.1} parent=87 // pred_fallthru
          _
      $region88: #{tpu_custom_call.1} parent=5 // pred_fallthru
        _
    $region6: #{tpu_custom_call.1} parent=1 // loop_footer
      %s25 = sadd.s32 1, %s21
    $region7: #{tpu_custom_call.1} parent=1 // loop_footer_branch
      %20 = sbr.rel target = $region3
    $region8: #{tpu_custom_call.1} parent=1 // loop_exit
      _
    %870 = vsyncpa [#allocation8], 1
    %s871 = scalar_lea.sflag [#allocation8], 1
    %872 = vsyncpa %s871, 1
    %873 = vsyncpa [#allocation11], 1
    %874 = vsyncpa [#allocation14], 1
    %875 = vsyncpa [#allocation9], 1
    %s876 = scalar_lea.sflag [#allocation9], 1
    %877 = vsyncpa %s876, 1

</llo_original>
